<compile_context>
chip_gen: v7x
topology: tpu7x:2x2x1
jax: 0.10.0
libtpu: 0.0.40
codegen_flags: <defaults>
</compile_context>

<pallas_src>
import jax
import jax.numpy as jnp
from jax import lax
from jax.experimental import pallas as pl
from jax.experimental.pallas import tpu as pltpu


LANE = 128
SUBLANE = 8


def _round_up(x, m):
    return (x + m - 1) // m * m


def fasttext_kernel(ids_ref, m_ref, b1_ref, w2_ref, b2_ref, o_ref, acc_ref):
    # Grid: (batch tiles [parallel], vocab tiles [arbitrary / reduction]).
    # ids_ref: (TB, S) int32      m_ref:  (TV, H)  = rows of embed_table @ w1
    # b1_ref:  (1, H)             w2_ref: (H, Op)   b2_ref: (1, Op)
    # o_ref:   (TB, Op)           acc_ref: (TB, H) f32 scratch accumulator
    v = pl.program_id(1)
    nv = pl.num_programs(1)

    @pl.when(v == 0)
    def _():
        acc_ref[...] = jnp.zeros_like(acc_ref)

    ids = ids_ref[...]                       # (TB, S)
    tb, s = ids.shape
    tv = m_ref.shape[0]
    base = v * tv                            # element offset of this vocab tile

    # 2-D iota hoisted ONCE (JAX does not CSE broadcast_in_dim), offset by tile.
    vocab_iota = base + lax.broadcasted_iota(jnp.int32, (tb, tv), 1)

    # Statically-unrolled accumulation over the short sequence axis: only a
    # (TB, TV) accumulator stays live; duplicate tokens are counted correctly.
    counts = jnp.zeros((tb, tv), jnp.float32)
    for si in range(s):
        counts = counts + (ids[:, si:si + 1] == vocab_iota).astype(jnp.float32)

    # Fused mean-pool + fc1 partial product: lane-dense N = H matmul on the MXU.
    acc_ref[...] += jnp.dot(counts, m_ref[...],
                            preferred_element_type=jnp.float32)

    @pl.when(v == nv - 1)
    def _():
        inv_s = 1.0 / s                                  # mean scale, applied on (TB, H)
        h = acc_ref[...] * inv_s + b1_ref[...]           # fc1
        h = jnp.maximum(h, 0.0)                          # ReLU
        out = jnp.dot(h, w2_ref[...],
                      preferred_element_type=jnp.float32) + b2_ref[...]  # fc2
        o_ref[...] = out.astype(o_ref.dtype)


def fasttext_prepare_params(embed_table, w1, b1, w2, b2):
    """One-time parameter prep (fold + lane padding). Cache the result; do NOT
    call per forward step — it rewrites O(V*H) bytes in HBM."""
    V1, E = embed_table.shape          # V1 = vocab_size + 1
    H = w1.shape[1]
    O = w2.shape[1]

    TV = min(2048, _round_up(V1, LANE))            # vocab tile (multiple of 128 lanes)
    Vp = _round_up(V1, TV)
    Op = _round_up(O, LANE)                        # lane-dense output store

    # Fold embedding gather + fc1: M = embed_table @ w1  (HIGHEST precision,
    # one-time cost). The 1/S mean scale is applied in-kernel on (TB, H).
    m = jnp.dot(embed_table.astype(jnp.float32), w1.astype(jnp.float32),
                precision=jax.lax.Precision.HIGHEST)              # (V1, H)
    m_p = jnp.zeros((Vp, H), jnp.float32).at[:V1, :].set(m)

    b1_2d = b1.reshape(1, H).astype(jnp.float32)
    w2_p = jnp.zeros((H, Op), jnp.float32).at[:, :O].set(w2.astype(jnp.float32))
    b2_p = jnp.zeros((1, Op), jnp.float32).at[:, :O].set(
        b2.reshape(1, O).astype(jnp.float32))

    return {"m": m_p, "b1": b1_2d, "w2": w2_p, "b2": b2_p,
            "tv": TV, "out_dim": O}


def _vmem_limit_bytes(TB, S, TV, H, Op):
    f32 = 4
    tiles = (TB * S * 4 + TV * H * f32 + H * f32 + H * Op * f32
             + Op * f32 + TB * Op * f32)
    scratch = TB * H * f32
    interm = TB * TV * f32 + 2 * TB * H * f32 + TB * Op * f32
    budget = 2 * tiles + scratch + interm + (8 << 20)   # double-buffered + headroom
    return int(min(max(budget, 16 << 20), 64 << 20))    # legal on v5e/v6e/v7x


def fasttext_forward(token_ids, params):
    """token_ids: (B, S) int32; returns (B, output_dim) f32.

    Note: like nn.Embedding, ids are assumed in-range [0, vocab_size]; padded
    vocab rows are zero so slightly-out-of-range ids silently contribute 0
    instead of raising (PyTorch would error)."""
    B, S = token_ids.shape
    m_p, b1_2d, w2_p, b2_p = params["m"], params["b1"], params["w2"], params["b2"]
    TV, O = params["tv"], params["out_dim"]
    Vp, H = m_p.shape
    Op = w2_p.shape[1]

    # Batch tile: multiple of 8 sublanes. (On v6e with very large B this can be
    # raised to 256; 128 keeps the (TB, TV) counts tile small on v7x.)
    TB = min(128, _round_up(B, SUBLANE))
    Bp = _round_up(B, TB)
    if Bp == B:
        ids_p = token_ids.astype(jnp.int32)
    else:
        ids_p = jnp.zeros((Bp, S), jnp.int32).at[:B, :].set(token_ids)

    out_p = pl.pallas_call(
        fasttext_kernel,
        out_shape=jax.ShapeDtypeStruct((Bp, Op), jnp.float32),
        grid=(pl.cdiv(Bp, TB), Vp // TV),
        in_specs=[
            pl.BlockSpec((TB, S), lambda i, v: (i, 0)),    # token ids (batch-tiled)
            pl.BlockSpec((TV, H), lambda i, v: (v, 0)),    # folded table@w1 (vocab-tiled)
            pl.BlockSpec((1, H), lambda i, v: (0, 0)),     # fc1 bias
            pl.BlockSpec((H, Op), lambda i, v: (0, 0)),    # fc2 weight (lane-padded)
            pl.BlockSpec((1, Op), lambda i, v: (0, 0)),    # fc2 bias (lane-padded)
        ],
        out_specs=pl.BlockSpec((TB, Op), lambda i, v: (i, 0)),
        scratch_shapes=[pltpu.VMEM((TB, H), jnp.float32)],
        compiler_params=pltpu.CompilerParams(
            dimension_semantics=("parallel", "arbitrary"),
            vmem_limit_bytes=_vmem_limit_bytes(TB, S, TV, H, Op)),
    )(ids_p, m_p, b1_2d, w2_p, b2_p)

    return out_p[:B, :O]


if __name__ == "__main__":
    # Small, module-consistent shapes.
    vocab_size = 50
    embed_dim = 32
    hidden_dim = 128     # fixed by the module (fc1 -> 128)
    output_dim = 8
    batch = 2
    seq_len = 8

    key = jax.random.PRNGKey(0)
    k_emb, k_w1, k_b1, k_w2, k_b2, k_tok = jax.random.split(key, 6)

    # Deterministic parameter init (PyTorch-like scales; synthetic, no checkpoint).
    embed_table = jax.random.normal(k_emb, (vocab_size + 1, embed_dim),
                                    dtype=jnp.float32)
    lim1 = 1.0 / (embed_dim ** 0.5)
    w1 = jax.random.uniform(k_w1, (embed_dim, hidden_dim),
                            minval=-lim1, maxval=lim1, dtype=jnp.float32)
    b1 = jax.random.uniform(k_b1, (hidden_dim,),
                            minval=-lim1, maxval=lim1, dtype=jnp.float32)
    lim2 = 1.0 / (hidden_dim ** 0.5)
    w2 = jax.random.uniform(k_w2, (hidden_dim, output_dim),
                            minval=-lim2, maxval=lim2, dtype=jnp.float32)
    b2 = jax.random.uniform(k_b2, (output_dim,),
                            minval=-lim2, maxval=lim2, dtype=jnp.float32)

    token_ids = jax.random.randint(k_tok, (batch, seq_len),
                                   minval=0, maxval=vocab_size + 1,
                                   dtype=jnp.int32)

    params = fasttext_prepare_params(embed_table, w1, b1, w2, b2)  # one-time prep
    out = fasttext_forward(token_ids, params)
    out = jax.block_until_ready(out)

    # Pure-JAX reference check (same math, no Pallas).
    emb_ref = jnp.take(embed_table, token_ids, axis=0)
    pooled_ref = emb_ref.mean(axis=1)
    h_ref = jnp.maximum(pooled_ref @ w1 + b1, 0.0)
    ref = h_ref @ w2 + b2
    assert out.shape == (batch, output_dim)
    # Tolerance accounts for the (table @ w1) re-association of the fused path.
    assert jnp.allclose(out, ref, atol=1e-3, rtol=1e-3)

    print("KERNEL_OK")
</pallas_src>

<mosaic_0001>
module attributes {stable_mosaic.version = 11 : i64} {
  func.func @fasttext_kernel(%arg0: i32, %arg1: i32, %arg2: memref<8x8xi32, #tpu.memory_space<vmem>>, %arg3: memref<128x128xf32, #tpu.memory_space<vmem>>, %arg4: memref<1x128xf32, #tpu.memory_space<vmem>>, %arg5: memref<128x128xf32, #tpu.memory_space<vmem>>, %arg6: memref<1x128xf32, #tpu.memory_space<vmem>>, %arg7: memref<8x128xf32, #tpu.memory_space<vmem>>, %arg8: memref<8x128xf32, #tpu.memory_space<vmem>>) attributes {dimension_semantics = [#tpu.dimension_semantics<parallel>, #tpu.dimension_semantics<arbitrary>], iteration_bounds = array<i64: 1, 1>, scalar_prefetch = 0 : i64, scratch_operands = 1 : i64, tpu.core_type = #tpu.core_type<tc>, window_params = [{transform_indices = @transform_0, window_bounds = array<i64: 8, 8>}, {transform_indices = @transform_1, window_bounds = array<i64: 128, 128>}, {pipeline_mode = #tpu.pipeline_mode<synchronous>, transform_indices = @transform_2, window_bounds = array<i64: 1, 128>}, {pipeline_mode = #tpu.pipeline_mode<synchronous>, transform_indices = @transform_3, window_bounds = array<i64: 128, 128>}, {pipeline_mode = #tpu.pipeline_mode<synchronous>, transform_indices = @transform_4, window_bounds = array<i64: 1, 128>}, {transform_indices = @transform_5, window_bounds = array<i64: 8, 128>}]} {
    %c0_i32 = arith.constant 0 : i32
    %0 = arith.cmpi eq, %arg1, %c0_i32 : i32
    %1 = arith.extui %0 : i1 to i32
    %c0_i32_0 = arith.constant 0 : i32
    %2 = arith.cmpi ne, %1, %c0_i32_0 : i32
    scf.if %2 {
      %cst_11 = arith.constant 0.000000e+00 : f32
      %65 = vector.broadcast %cst_11 : f32 to vector<8x128xf32>
      %c0_12 = arith.constant 0 : index
      %c0_13 = arith.constant 0 : index
      %66 = vector.load %arg8[%c0_12, %c0_13] : memref<8x128xf32, #tpu.memory_space<vmem>>, vector<8x128xf32>
      tpu.vector_store %arg8[%c0_12, %c0_13], %65 {strides = array<i32>} : memref<8x128xf32, #tpu.memory_space<vmem>>, vector<8x128xf32>,
    } else {
    }
    %c0 = arith.constant 0 : index
    %c0_1 = arith.constant 0 : index
    %3 = vector.load %arg2[%c0, %c0_1] : memref<8x8xi32, #tpu.memory_space<vmem>>, vector<8x8xi32>
    %c128_i32 = arith.constant 128 : i32
    %4 = arith.muli %arg1, %c128_i32 : i32
    %5 = tpu.iota {dimensions = array<i32: 1>} : vector<8x128xi32>
    %6 = vector.broadcast %4 : i32 to vector<8x128xi32>
    %7 = arith.addi %6, %5 : vector<8x128xi32>
    %cst = arith.constant 0.000000e+00 : f32
    %8 = vector.broadcast %cst : f32 to vector<8x128xf32>
    %9 = vector.extract_strided_slice %3 {offsets = [0, 0], sizes = [8, 1], strides = [1, 1]} : vector<8x8xi32> to vector<8x1xi32>
    %10 = vector.broadcast %9 : vector<8x1xi32> to vector<8x128xi32>
    %11 = arith.cmpi eq, %10, %7 : vector<8x128xi32>
    %12 = arith.extui %11 : vector<8x128xi1> to vector<8x128xi32>
    %13 = arith.sitofp %12 : vector<8x128xi32> to vector<8x128xf32>
    %14 = arith.addf %8, %13 : vector<8x128xf32>
    %15 = vector.extract_strided_slice %3 {offsets = [0, 1], sizes = [8, 1], strides = [1, 1]} : vector<8x8xi32> to vector<8x1xi32>
    %16 = vector.broadcast %15 : vector<8x1xi32> to vector<8x128xi32>
    %17 = arith.cmpi eq, %16, %7 : vector<8x128xi32>
    %18 = arith.extui %17 : vector<8x128xi1> to vector<8x128xi32>
    %19 = arith.sitofp %18 : vector<8x128xi32> to vector<8x128xf32>
    %20 = arith.addf %14, %19 : vector<8x128xf32>
    %21 = vector.extract_strided_slice %3 {offsets = [0, 2], sizes = [8, 1], strides = [1, 1]} : vector<8x8xi32> to vector<8x1xi32>
    %22 = vector.broadcast %21 : vector<8x1xi32> to vector<8x128xi32>
    %23 = arith.cmpi eq, %22, %7 : vector<8x128xi32>
    %24 = arith.extui %23 : vector<8x128xi1> to vector<8x128xi32>
    %25 = arith.sitofp %24 : vector<8x128xi32> to vector<8x128xf32>
    %26 = arith.addf %20, %25 : vector<8x128xf32>
    %27 = vector.extract_strided_slice %3 {offsets = [0, 3], sizes = [8, 1], strides = [1, 1]} : vector<8x8xi32> to vector<8x1xi32>
    %28 = vector.broadcast %27 : vector<8x1xi32> to vector<8x128xi32>
    %29 = arith.cmpi eq, %28, %7 : vector<8x128xi32>
    %30 = arith.extui %29 : vector<8x128xi1> to vector<8x128xi32>
    %31 = arith.sitofp %30 : vector<8x128xi32> to vector<8x128xf32>
    %32 = arith.addf %26, %31 : vector<8x128xf32>
    %33 = vector.extract_strided_slice %3 {offsets = [0, 4], sizes = [8, 1], strides = [1, 1]} : vector<8x8xi32> to vector<8x1xi32>
    %34 = vector.broadcast %33 : vector<8x1xi32> to vector<8x128xi32>
    %35 = arith.cmpi eq, %34, %7 : vector<8x128xi32>
    %36 = arith.extui %35 : vector<8x128xi1> to vector<8x128xi32>
    %37 = arith.sitofp %36 : vector<8x128xi32> to vector<8x128xf32>
    %38 = arith.addf %32, %37 : vector<8x128xf32>
    %39 = vector.extract_strided_slice %3 {offsets = [0, 5], sizes = [8, 1], strides = [1, 1]} : vector<8x8xi32> to vector<8x1xi32>
    %40 = vector.broadcast %39 : vector<8x1xi32> to vector<8x128xi32>
    %41 = arith.cmpi eq, %40, %7 : vector<8x128xi32>
    %42 = arith.extui %41 : vector<8x128xi1> to vector<8x128xi32>
    %43 = arith.sitofp %42 : vector<8x128xi32> to vector<8x128xf32>
    %44 = arith.addf %38, %43 : vector<8x128xf32>
    %45 = vector.extract_strided_slice %3 {offsets = [0, 6], sizes = [8, 1], strides = [1, 1]} : vector<8x8xi32> to vector<8x1xi32>
    %46 = vector.broadcast %45 : vector<8x1xi32> to vector<8x128xi32>
    %47 = arith.cmpi eq, %46, %7 : vector<8x128xi32>
    %48 = arith.extui %47 : vector<8x128xi1> to vector<8x128xi32>
    %49 = arith.sitofp %48 : vector<8x128xi32> to vector<8x128xf32>
    %50 = arith.addf %44, %49 : vector<8x128xf32>
    %51 = vector.extract_strided_slice %3 {offsets = [0, 7], sizes = [8, 1], strides = [1, 1]} : vector<8x8xi32> to vector<8x1xi32>
    %52 = vector.broadcast %51 : vector<8x1xi32> to vector<8x128xi32>
    %53 = arith.cmpi eq, %52, %7 : vector<8x128xi32>
    %54 = arith.extui %53 : vector<8x128xi1> to vector<8x128xi32>
    %55 = arith.sitofp %54 : vector<8x128xi32> to vector<8x128xf32>
    %56 = arith.addf %50, %55 : vector<8x128xf32>
    %c0_2 = arith.constant 0 : index
    %c0_3 = arith.constant 0 : index
    %57 = vector.load %arg8[%c0_2, %c0_3] : memref<8x128xf32, #tpu.memory_space<vmem>>, vector<8x128xf32>
    %c0_4 = arith.constant 0 : index
    %c0_5 = arith.constant 0 : index
    %58 = vector.load %arg3[%c0_4, %c0_5] : memref<128x128xf32, #tpu.memory_space<vmem>>, vector<128x128xf32>
    %cst_6 = arith.constant dense<0.000000e+00> : vector<8x128xf32>
    %59 = tpu.matmul %56, %58, %cst_6 {dimension_numbers = #tpu.dot_dimension_numbers<[1], [0], [0], [1], [0, 0, 1, 1], [], []>} : vector<8x128xf32>, vector<128x128xf32>, vector<8x128xf32> -> vector<8x128xf32>
    %60 = arith.addf %57, %59 : vector<8x128xf32>
    %c0_7 = arith.constant 0 : index
    %c0_8 = arith.constant 0 : index
    %61 = vector.load %arg8[%c0_7, %c0_8] : memref<8x128xf32, #tpu.memory_space<vmem>>, vector<8x128xf32>
    tpu.vector_store %arg8[%c0_7, %c0_8], %60 {strides = array<i32>} : memref<8x128xf32, #tpu.memory_space<vmem>>, vector<8x128xf32>,
    %c0_i32_9 = arith.constant 0 : i32
    %62 = arith.cmpi eq, %arg1, %c0_i32_9 : i32
    %63 = arith.extui %62 : i1 to i32
    %c0_i32_10 = arith.constant 0 : i32
    %64 = arith.cmpi ne, %63, %c0_i32_10 : i32
    scf.if %64 {
      %c0_11 = arith.constant 0 : index
      %c0_12 = arith.constant 0 : index
      %65 = vector.load %arg8[%c0_11, %c0_12] : memref<8x128xf32, #tpu.memory_space<vmem>>, vector<8x128xf32>
      %cst_13 = arith.constant 1.250000e-01 : f32
      %66 = vector.broadcast %cst_13 : f32 to vector<8x128xf32>
      %67 = arith.mulf %65, %66 : vector<8x128xf32>
      %c0_14 = arith.constant 0 : index
      %c0_15 = arith.constant 0 : index
      %68 = vector.load %arg4[%c0_14, %c0_15] : memref<1x128xf32, #tpu.memory_space<vmem>>, vector<1x128xf32>
      %69 = vector.broadcast %68 : vector<1x128xf32> to vector<8x128xf32>
      %70 = arith.addf %67, %69 : vector<8x128xf32>
      %cst_16 = arith.constant 0.000000e+00 : f32
      %71 = vector.broadcast %cst_16 : f32 to vector<8x128xf32>
      %72 = arith.maximumf %70, %71 : vector<8x128xf32>
      %c0_17 = arith.constant 0 : index
      %c0_18 = arith.constant 0 : index
      %73 = vector.load %arg5[%c0_17, %c0_18] : memref<128x128xf32, #tpu.memory_space<vmem>>, vector<128x128xf32>
      %cst_19 = arith.constant dense<0.000000e+00> : vector<8x128xf32>
      %74 = tpu.matmul %72, %73, %cst_19 {dimension_numbers = #tpu.dot_dimension_numbers<[1], [0], [0], [1], [0, 0, 1, 1], [], []>} : vector<8x128xf32>, vector<128x128xf32>, vector<8x128xf32> -> vector<8x128xf32>
      %c0_20 = arith.constant 0 : index
      %c0_21 = arith.constant 0 : index
      %75 = vector.load %arg6[%c0_20, %c0_21] : memref<1x128xf32, #tpu.memory_space<vmem>>, vector<1x128xf32>
      %76 = vector.broadcast %75 : vector<1x128xf32> to vector<8x128xf32>
      %77 = arith.addf %74, %76 : vector<8x128xf32>
      %c0_22 = arith.constant 0 : index
      %c0_23 = arith.constant 0 : index
      %78 = vector.load %arg7[%c0_22, %c0_23] : memref<8x128xf32, #tpu.memory_space<vmem>>, vector<8x128xf32>
      tpu.vector_store %arg7[%c0_22, %c0_23], %77 {strides = array<i32>} : memref<8x128xf32, #tpu.memory_space<vmem>>, vector<8x128xf32>,
    } else {
    }
    return
  }
  func.func @transform_0(%arg0: i32, %arg1: i32) -> (i32, i32) {
    %c0_i32 = arith.constant 0 : i32
    %c0_i32_0 = arith.constant 0 : i32
    return %arg0, %c0_i32 : i32, i32
  }
  func.func @transform_1(%arg0: i32, %arg1: i32) -> (i32, i32) {
    %c0_i32 = arith.constant 0 : i32
    %c0_i32_0 = arith.constant 0 : i32
    return %arg1, %c0_i32 : i32, i32
  }
  func.func @transform_2(%arg0: i32, %arg1: i32) -> (i32, i32) {
    %c0_i32 = arith.constant 0 : i32
    %c0_i32_0 = arith.constant 0 : i32
    %c0_i32_1 = arith.constant 0 : i32
    return %c0_i32, %c0_i32_0 : i32, i32
  }
  func.func @transform_3(%arg0: i32, %arg1: i32) -> (i32, i32) {
    %c0_i32 = arith.constant 0 : i32
    %c0_i32_0 = arith.constant 0 : i32
    %c0_i32_1 = arith.constant 0 : i32
    return %c0_i32, %c0_i32_0 : i32, i32
  }
  func.func @transform_4(%arg0: i32, %arg1: i32) -> (i32, i32) {
    %c0_i32 = arith.constant 0 : i32
    %c0_i32_0 = arith.constant 0 : i32
    %c0_i32_1 = arith.constant 0 : i32
    return %c0_i32, %c0_i32_0 : i32, i32
  }
  func.func @transform_5(%arg0: i32, %arg1: i32) -> (i32, i32) {
    %c0_i32 = arith.constant 0 : i32
    %c0_i32_0 = arith.constant 0 : i32
    return %arg0, %c0_i32 : i32, i32
  }
}

</mosaic_0001>

<llo_original>
// kernel: tpu_custom_call.1
$region0: #{tpu_custom_call.1}
  #allocation0 [shape = 'u32[]', space=smem, size = 0x4, offset = 0x4, fixed_abs, tag = 'smem constant byte address 0x4 - core index']
  #allocation1 [shape = 'u32[144,128]{1,0:T(1,128)}', space=vmem, size = 0x12000, scoped, tag = 'internal scratch']
  #allocation2 [shape = 'f32[8,128]{1,0:T(8,128)}', space=vmem, size = 0x1000, scoped, tag = 'scratch operand']
  %s0 = inlined_call_operand.hbm [shape: s32[8,8], index: 0, kind: input, shape index: {}]
  %s1 = inlined_call_operand.hbm [shape: f32[128,128], index: 1, kind: input, shape index: {}]
  %s2 = inlined_call_operand.vmem [shape: f32[1,128], index: 2, kind: input, shape index: {}]
  %s3 = inlined_call_operand.hbm [shape: f32[128,128], index: 3, kind: input, shape index: {}]
  %s4 = inlined_call_operand.vmem [shape: f32[1,128], index: 4, kind: input, shape index: {}]
  %s5 = inlined_call_operand.hbm [shape: f32[8,128], index: 5, kind: output, shape index: {}]
  %s6 = sld [smem:[#allocation0]]
  $region50: #{tpu_custom_call.1} parent=0
    _
  %s8 = ssub.s32 1, %s6
  %s9 = scalar_select 0, %s8, %s6
  $region1: #{tpu_custom_call.1} parent=0
    #allocation3 [shape = 'u8[4096]{0}', space=vmem, size = 0x1000, scoped, tag = 'input window, operand 0, single buffered']
    #allocation4 [shape = 's32[1]{0}', space=sflag, size = 0x4, scoped, tag = 'scoped memory for tpu_custom_call.1']
    #allocation5 [shape = 's32[1]{0}', space=sflag, size = 0x4, scoped, tag = 'scoped memory for tpu_custom_call.1']
    #allocation6 [shape = 'u8[65536]{0}', space=vmem, size = 0x10000, scoped, tag = 'input window, operand 1, single buffered']
    #allocation7 [shape = 's32[1]{0}', space=sflag, size = 0x4, scoped, tag = 'scoped memory for tpu_custom_call.1']
    #allocation8 [shape = 'u8[65536]{0}', space=vmem, size = 0x10000, scoped, tag = 'input window, operand 3, single buffered']
    #allocation9 [shape = 'u8[4096]{0}', space=vmem, size = 0x1000, scoped, tag = 'output window, operand 0, single buffered']
    %10 = vsyncpa [#allocation4], 0
    %11 = vsyncpa [#allocation7], 0
    %12 = vsyncpa [#allocation5], 0
    // Predicated region
    $region2: #{tpu_custom_call.1} parent=1 // pred_check
      _
    $region3: #{tpu_custom_call.1} parent=1 // pred_check_branch
      %14 = sbr.rel (0) target = $region5
    $region4: #{tpu_custom_call.1} parent=1 // pred_region
      %s16 = ssub.s32 128, 128
      %17 = vsyncadd [#allocation4], %s16
      %s19 = sshll.u32 [#allocation3], 4
      %s20 = int_to_ptr.vmem [resolvable:$true] %s19
      %22 = dma.hbm_to_vmem [thread:$0]  %s0, 128, %s20, [#allocation4]
    $region5: #{tpu_custom_call.1} parent=1 // pred_fallthru
      _
    // Predicated region
    $region6: #{tpu_custom_call.1} parent=1 // pred_check
      _
    $region7: #{tpu_custom_call.1} parent=1 // pred_check_branch
      %24 = sbr.rel (0) target = $region9
    $region8: #{tpu_custom_call.1} parent=1 // pred_region
      %s26 = ssub.s32 2048, 2048
      %27 = vsyncadd [#allocation7], %s26
      %s28 = sshll.u32 [#allocation6], 4
      %s29 = int_to_ptr.vmem [resolvable:$true] %s28
      %34 = dma.hbm_to_vmem [thread:$0]  %s1, 2048, %s29, [#allocation7], 128, 128, 8
    $region9: #{tpu_custom_call.1} parent=1 // pred_fallthru
      _
    // Predicated region
    $region10: #{tpu_custom_call.1} parent=1 // pred_check
      _
    $region11: #{tpu_custom_call.1} parent=1 // pred_check_branch
      %36 = sbr.rel (0) target = $region13
    $region12: #{tpu_custom_call.1} parent=1 // pred_region
      _
    $region13: #{tpu_custom_call.1} parent=1 // pred_fallthru
      _
    // Predicated region
    $region14: #{tpu_custom_call.1} parent=1 // pred_check
      _
    $region15: #{tpu_custom_call.1} parent=1 // pred_check_branch
      %38 = sbr.rel (0) target = $region17
    $region16: #{tpu_custom_call.1} parent=1 // pred_region
      %s40 = ssub.s32 2048, 2048
      %41 = vsyncadd [#allocation7], %s40
      %s42 = sshll.u32 [#allocation8], 4
      %s43 = int_to_ptr.vmem [resolvable:$true] %s42
      %48 = dma.hbm_to_vmem [thread:$0]  %s3, 2048, %s43, [#allocation7], 128, 128, 8
    $region17: #{tpu_custom_call.1} parent=1 // pred_fallthru
      _
    // Predicated region
    $region18: #{tpu_custom_call.1} parent=1 // pred_check
      _
    $region19: #{tpu_custom_call.1} parent=1 // pred_check_branch
      %50 = sbr.rel (0) target = $region21
    $region20: #{tpu_custom_call.1} parent=1 // pred_region
      _
    $region21: #{tpu_custom_call.1} parent=1 // pred_fallthru
      _
    // Predicated region
    $region22: #{tpu_custom_call.1} parent=1 // pred_check
      _
    $region23: #{tpu_custom_call.1} parent=1 // pred_check_branch
      %52 = sbr.rel (0) target = $region25
    $region24: #{tpu_custom_call.1} parent=1 // pred_region
      %53 = dma.done [#allocation4], 128
    $region25: #{tpu_custom_call.1} parent=1 // pred_fallthru
      _
    // Predicated region
    $region26: #{tpu_custom_call.1} parent=1 // pred_check
      _
    $region27: #{tpu_custom_call.1} parent=1 // pred_check_branch
      %55 = sbr.rel (0) target = $region29
    $region28: #{tpu_custom_call.1} parent=1 // pred_region
      %56 = dma.done [#allocation7], 2048
    $region29: #{tpu_custom_call.1} parent=1 // pred_fallthru
      _
    // Predicated region
    $region30: #{tpu_custom_call.1} parent=1 // pred_check
      _
    $region31: #{tpu_custom_call.1} parent=1 // pred_check_branch
      %58 = sbr.rel (0) target = $region33
    $region32: #{tpu_custom_call.1} parent=1 // pred_region
      %59 = dma.done [#allocation7], 2048
    $region33: #{tpu_custom_call.1} parent=1 // pred_fallthru
      _
    %p60 = scmp.eq.s32.totalorder 0, 0
    // Predicated region
    $region34: #{tpu_custom_call.1} parent=1 // pred_check
      %p61 = pneg %p60
    $region35: #{tpu_custom_call.1} parent=1 // pred_check_branch
      %63 = sbr.rel (%p61) target = $region37
    $region36: #{tpu_custom_call.1} parent=1 // pred_region
      %64 = vst [vmem:[#allocation2] sm:$0xff] 0.0
    $region37: #{tpu_custom_call.1} parent=1 // pred_fallthru
      _
    %v65 = vld [vmem:[#allocation3] sm:$0xff]
    %s66 = smul.u32 0, 128
    %v67 = vlaneseq
    %v68 = vand.u32 %v67, 127
    %v69 = vstv %s66
    %v70 = vadd.s32 %v69, %v68
    %71 = vset.pattern.permute.xlu0 0
    %72 = vperm.xlu0 %71, %v65
    %v73 = vpop.permute.xlu0 %72
    %vm74 = vcmp.eq.s32.totalorder %v73, %v70
    %v75 = vsel %vm74, 1, 0
    %v76 = vcvt.s32.f32 %v75
    %v77 = vadd.f32 %v76, 0.0
    %78 = vset.pattern.permute.xlu0 1
    %79 = vperm.xlu0 %78, %v65
    %v80 = vpop.permute.xlu0 %79
    %vm81 = vcmp.eq.s32.totalorder %v80, %v70
    %v82 = vsel %vm81, 1, 0
    %v83 = vcvt.s32.f32 %v82
    %v84 = vadd.f32 %v77, %v83
    %85 = vset.pattern.permute.xlu0 2
    %86 = vperm.xlu0 %85, %v65
    %v87 = vpop.permute.xlu0 %86
    %vm88 = vcmp.eq.s32.totalorder %v87, %v70
    %v89 = vsel %vm88, 1, 0
    %v90 = vcvt.s32.f32 %v89
    %v91 = vadd.f32 %v84, %v90
    %92 = vset.pattern.permute.xlu0 3
    %93 = vperm.xlu0 %92, %v65
    %v94 = vpop.permute.xlu0 %93
    %vm95 = vcmp.eq.s32.totalorder %v94, %v70
    %v96 = vsel %vm95, 1, 0
    %v97 = vcvt.s32.f32 %v96
    %v98 = vadd.f32 %v91, %v97
    %99 = vset.pattern.permute.xlu0 4
    %100 = vperm.xlu0 %99, %v65
    %v101 = vpop.permute.xlu0 %100
    %vm102 = vcmp.eq.s32.totalorder %v101, %v70
    %v103 = vsel %vm102, 1, 0
    %v104 = vcvt.s32.f32 %v103
    %v105 = vadd.f32 %v98, %v104
    %106 = vset.pattern.permute.xlu0 5
    %107 = vperm.xlu0 %106, %v65
    %v108 = vpop.permute.xlu0 %107
    %vm109 = vcmp.eq.s32.totalorder %v108, %v70
    %v110 = vsel %vm109, 1, 0
    %v111 = vcvt.s32.f32 %v110
    %v112 = vadd.f32 %v105, %v111
    %113 = vset.pattern.permute.xlu0 6
    %114 = vperm.xlu0 %113, %v65
    %v115 = vpop.permute.xlu0 %114
    %vm116 = vcmp.eq.s32.totalorder %v115, %v70
    %v117 = vsel %vm116, 1, 0
    %v118 = vcvt.s32.f32 %v117
    %v119 = vadd.f32 %v112, %v118
    %120 = vset.pattern.permute.xlu0 7
    %121 = vperm.xlu0 %120, %v65
    %v122 = vpop.permute.xlu0 %121
    %vm123 = vcmp.eq.s32.totalorder %v122, %v70
    %v124 = vsel %vm123, 1, 0
    %v125 = vcvt.s32.f32 %v124
    %v126 = vadd.f32 %v119, %v125
    %v127 = vld [vmem:[#allocation2] sm:$0xff]
    %v128 = vld [vmem:[#allocation6] sm:$0xff]
    %v129 = vld [vmem:[#allocation6 + $0x8] sm:$0xff]
    %v130 = vld [vmem:[#allocation6 + $0x10] sm:$0xff]
    %v131 = vld [vmem:[#allocation6 + $0x18] sm:$0xff]
    %v132 = vld [vmem:[#allocation6 + $0x20] sm:$0xff]
    %v133 = vld [vmem:[#allocation6 + $0x28] sm:$0xff]
    %v134 = vld [vmem:[#allocation6 + $0x30] sm:$0xff]
    %v135 = vld [vmem:[#allocation6 + $0x38] sm:$0xff]
    %v136 = vld [vmem:[#allocation6 + $0x40] sm:$0xff]
    %v137 = vld [vmem:[#allocation6 + $0x48] sm:$0xff]
    %v138 = vld [vmem:[#allocation6 + $0x50] sm:$0xff]
    %v139 = vld [vmem:[#allocation6 + $0x58] sm:$0xff]
    %v140 = vld [vmem:[#allocation6 + $0x60] sm:$0xff]
    %v141 = vld [vmem:[#allocation6 + $0x68] sm:$0xff]
    %v142 = vld [vmem:[#allocation6 + $0x70] sm:$0xff]
    %v143 = vld [vmem:[#allocation6 + $0x78] sm:$0xff]
    %144 = vmatprep.subr.mxu0 0.0
    %145 = vmatpush1.msra.mxu0 %v128
    %146 = vmatprep.subr.mxu0 0.0
    %147 = vmatpush1.msra.mxu0 %v129
    %148 = vmatprep.subr.mxu0 0.0
    %149 = vmatpush1.msra.mxu0 %v130
    %150 = vmatprep.subr.mxu0 0.0
    %151 = vmatpush1.msra.mxu0 %v131
    %152 = vmatprep.subr.mxu0 0.0
    %153 = vmatpush1.msra.mxu0 %v132
    %154 = vmatprep.subr.mxu0 0.0
    %155 = vmatpush1.msra.mxu0 %v133
    %156 = vmatprep.subr.mxu0 0.0
    %157 = vmatpush1.msra.mxu0 %v134
    %158 = vmatprep.subr.mxu0 0.0
    %159 = vmatpush1.msra.mxu0 %v135
    %160 = vmatprep.subr.mxu0 0.0
    %161 = vmatpush1.msra.mxu0 %v136
    %162 = vmatprep.subr.mxu0 0.0
    %163 = vmatpush1.msra.mxu0 %v137
    %164 = vmatprep.subr.mxu0 0.0
    %165 = vmatpush1.msra.mxu0 %v138
    %166 = vmatprep.subr.mxu0 0.0
    %167 = vmatpush1.msra.mxu0 %v139
    %168 = vmatprep.subr.mxu0 0.0
    %169 = vmatpush1.msra.mxu0 %v140
    %170 = vmatprep.subr.mxu0 0.0
    %171 = vmatpush1.msra.mxu0 %v141
    %172 = vmatprep.subr.mxu0 0.0
    %173 = vmatpush1.msra.mxu0 %v142
    %174 = vmatprep.subr.mxu0 0.0
    %175 = vmatpush1.msra.mxu0 %v143
    %176 = vmatprep.subr.mxu0 0.0
    %177 = vmatpush1.msra.mxu0 0.0
    %178 = vmatprep.subr.mxu0 0.0
    %179 = vmatpush1.msra.mxu0 0.0
    %180 = vmatprep.subr.mxu0 0.0
    %181 = vmatpush1.msra.mxu0 0.0
    %182 = vmatprep.subr.mxu0 0.0
    %183 = vmatpush1.msra.mxu0 0.0
    %184 = vmatprep.subr.mxu0 0.0
    %185 = vmatpush1.msra.mxu0 0.0
    %186 = vmatprep.subr.mxu0 0.0
    %187 = vmatpush1.msra.mxu0 0.0
    %188 = vmatprep.subr.mxu0 0.0
    %189 = vmatpush1.msra.mxu0 0.0
    %190 = vmatprep.subr.mxu0 0.0
    %191 = vmatpush1.msra.mxu0 0.0
    %192 = vmatprep.subr.mxu0 0.0
    %193 = vmatpush1.msra.mxu0 0.0
    %194 = vmatprep.subr.mxu0 0.0
    %195 = vmatpush1.msra.mxu0 0.0
    %196 = vmatprep.subr.mxu0 0.0
    %197 = vmatpush1.msra.mxu0 0.0
    %198 = vmatprep.subr.mxu0 0.0
    %199 = vmatpush1.msra.mxu0 0.0
    %200 = vmatprep.subr.mxu0 0.0
    %201 = vmatpush1.msra.mxu0 0.0
    %202 = vmatprep.subr.mxu0 0.0
    %203 = vmatpush1.msra.mxu0 0.0
    %204 = vmatprep.subr.mxu0 0.0
    %205 = vmatpush1.msra.mxu0 0.0
    %206 = vmatprep.subr.mxu0 0.0
    %207 = vmatpush1.msra.mxu0 0.0
    %208 = vmatprep.mubr.f32.mxu0 0.0
    %209 = vmatmul.mubr.f32.gmra.mrb[0].mxu0 %v126
    %v210 = vpop.f32.mrb[0].mxu0
    %v211 = vadd.f32 0.0, %v210
    %v212 = vpop.f32.mrb[0].mxu0
    %213 = vdwg.mxu0
    %v214 = vadd.f32 %v127, %v211
    %215 = vst [vmem:[#allocation2] sm:$0xff] %v214
    // Predicated region
    $region38: #{tpu_custom_call.1} parent=1 // pred_check
      %p216 = pneg %p60
    $region39: #{tpu_custom_call.1} parent=1 // pred_check_branch
      %218 = sbr.rel (%p216) target = $region41
    $region40: #{tpu_custom_call.1} parent=1 // pred_region
      %v219 = vld [vmem:[#allocation2] sm:$0xff]
      %v220 = vmul.f32 %v219, 0.125
      %v221 = vld [vmem:[%s2] sm:$0x1]
      %v223 = vlaneseq
      %v224 = vshrl.u32 %v223, 7
      %v225 = vsub.s32 0, %v224
      %v226 = vrot.slane %v221, %v225
      %v228 = vadd.f32 %v220, %v226
      %v229 = vmax.f32 %v228, 0.0
      %v230 = vld [vmem:[#allocation8] sm:$0xff]
      %v231 = vld [vmem:[#allocation8 + $0x8] sm:$0xff]
      %v232 = vld [vmem:[#allocation8 + $0x10] sm:$0xff]
      %v233 = vld [vmem:[#allocation8 + $0x18] sm:$0xff]
      %v234 = vld [vmem:[#allocation8 + $0x20] sm:$0xff]
      %v235 = vld [vmem:[#allocation8 + $0x28] sm:$0xff]
      %v236 = vld [vmem:[#allocation8 + $0x30] sm:$0xff]
      %v237 = vld [vmem:[#allocation8 + $0x38] sm:$0xff]
      %v238 = vld [vmem:[#allocation8 + $0x40] sm:$0xff]
      %v239 = vld [vmem:[#allocation8 + $0x48] sm:$0xff]
      %v240 = vld [vmem:[#allocation8 + $0x50] sm:$0xff]
      %v241 = vld [vmem:[#allocation8 + $0x58] sm:$0xff]
      %v242 = vld [vmem:[#allocation8 + $0x60] sm:$0xff]
      %v243 = vld [vmem:[#allocation8 + $0x68] sm:$0xff]
      %v244 = vld [vmem:[#allocation8 + $0x70] sm:$0xff]
      %v245 = vld [vmem:[#allocation8 + $0x78] sm:$0xff]
      %v246 = vld [vmem:[%s4] sm:$0x1]
      %v248 = vlaneseq
      %v249 = vshrl.u32 %v248, 7
      %v250 = vsub.s32 0, %v249
      %v251 = vrot.slane %v246, %v250
      %253 = vmatprep.subr.mxu0 0.0
      %254 = vmatpush1.msra.mxu0 %v230
      %255 = vmatprep.subr.mxu0 0.0
      %256 = vmatpush1.msra.mxu0 %v231
      %257 = vmatprep.subr.mxu0 0.0
      %258 = vmatpush1.msra.mxu0 %v232
      %259 = vmatprep.subr.mxu0 0.0
      %260 = vmatpush1.msra.mxu0 %v233
      %261 = vmatprep.subr.mxu0 0.0
      %262 = vmatpush1.msra.mxu0 %v234
      %263 = vmatprep.subr.mxu0 0.0
      %264 = vmatpush1.msra.mxu0 %v235
      %265 = vmatprep.subr.mxu0 0.0
      %266 = vmatpush1.msra.mxu0 %v236
      %267 = vmatprep.subr.mxu0 0.0
      %268 = vmatpush1.msra.mxu0 %v237
      %269 = vmatprep.subr.mxu0 0.0
      %270 = vmatpush1.msra.mxu0 %v238
      %271 = vmatprep.subr.mxu0 0.0
      %272 = vmatpush1.msra.mxu0 %v239
      %273 = vmatprep.subr.mxu0 0.0
      %274 = vmatpush1.msra.mxu0 %v240
      %275 = vmatprep.subr.mxu0 0.0
      %276 = vmatpush1.msra.mxu0 %v241
      %277 = vmatprep.subr.mxu0 0.0
      %278 = vmatpush1.msra.mxu0 %v242
      %279 = vmatprep.subr.mxu0 0.0
      %280 = vmatpush1.msra.mxu0 %v243
      %281 = vmatprep.subr.mxu0 0.0
      %282 = vmatpush1.msra.mxu0 %v244
      %283 = vmatprep.subr.mxu0 0.0
      %284 = vmatpush1.msra.mxu0 %v245
      %285 = vmatprep.subr.mxu0 0.0
      %286 = vmatpush1.msra.mxu0 0.0
      %287 = vmatprep.subr.mxu0 0.0
      %288 = vmatpush1.msra.mxu0 0.0
      %289 = vmatprep.subr.mxu0 0.0
      %290 = vmatpush1.msra.mxu0 0.0
      %291 = vmatprep.subr.mxu0 0.0
      %292 = vmatpush1.msra.mxu0 0.0
      %293 = vmatprep.subr.mxu0 0.0
      %294 = vmatpush1.msra.mxu0 0.0
      %295 = vmatprep.subr.mxu0 0.0
      %296 = vmatpush1.msra.mxu0 0.0
      %297 = vmatprep.subr.mxu0 0.0
      %298 = vmatpush1.msra.mxu0 0.0
      %299 = vmatprep.subr.mxu0 0.0
      %300 = vmatpush1.msra.mxu0 0.0
      %301 = vmatprep.subr.mxu0 0.0
      %302 = vmatpush1.msra.mxu0 0.0
      %303 = vmatprep.subr.mxu0 0.0
      %304 = vmatpush1.msra.mxu0 0.0
      %305 = vmatprep.subr.mxu0 0.0
      %306 = vmatpush1.msra.mxu0 0.0
      %307 = vmatprep.subr.mxu0 0.0
      %308 = vmatpush1.msra.mxu0 0.0
      %309 = vmatprep.subr.mxu0 0.0
      %310 = vmatpush1.msra.mxu0 0.0
      %311 = vmatprep.subr.mxu0 0.0
      %312 = vmatpush1.msra.mxu0 0.0
      %313 = vmatprep.subr.mxu0 0.0
      %314 = vmatpush1.msra.mxu0 0.0
      %315 = vmatprep.subr.mxu0 0.0
      %316 = vmatpush1.msra.mxu0 0.0
      %317 = vmatprep.mubr.f32.mxu0 0.0
      %318 = vmatmul.mubr.f32.gmra.mrb[0].mxu0 %v229
      %v319 = vpop.f32.mrb[0].mxu0
      %v320 = vadd.f32 %v251, %v319
      %v321 = vpop.f32.mrb[0].mxu0
      %322 = vdwg.mxu0
      %323 = vst [vmem:[#allocation9] sm:$0xff] %v320
    $region41: #{tpu_custom_call.1} parent=1 // pred_fallthru
      _
    // Predicated region
    $region42: #{tpu_custom_call.1} parent=1 // pred_check
      _
    $region43: #{tpu_custom_call.1} parent=1 // pred_check_branch
      %325 = sbr.rel (0) target = $region45
    $region44: #{tpu_custom_call.1} parent=1 // pred_region
      %s327 = ssub.s32 128, 128
      %328 = vsyncadd [#allocation5], %s327
      %s330 = sshll.u32 [#allocation9], 4
      %s331 = int_to_ptr.vmem [resolvable:$true] %s330
      %333 = dma.vmem_to_hbm [thread:$0]  %s331, 128, %s5, [#allocation5]
    $region45: #{tpu_custom_call.1} parent=1 // pred_fallthru
      _
    // Predicated region
    $region46: #{tpu_custom_call.1} parent=1 // pred_check
      _
    $region47: #{tpu_custom_call.1} parent=1 // pred_check_branch
      %335 = sbr.rel (0) target = $region49
    $region48: #{tpu_custom_call.1} parent=1 // pred_region
      %336 = dma.done [#allocation5], 128
    $region49: #{tpu_custom_call.1} parent=1 // pred_fallthru
      _
    %337 = vsyncpa [#allocation4], 1
    %338 = vsyncpa [#allocation7], 1
    %339 = vsyncpa [#allocation5], 1

</llo_original>
